<compile_context>
chip_gen: v7x
topology: tpu7x:2x2x1
jax: 0.10.0
libtpu: 0.0.40
codegen_flags: <defaults>
</compile_context>

<pallas_src>
import math

import jax
import jax.numpy as jnp
from jax.experimental import pallas as pl
from jax.experimental.pallas import tpu as pltpu


def _round_up(x: int, m: int) -> int:
    return ((x + m - 1) // m) * m


def _cdiv(a: int, b: int) -> int:
    return -(-a // b)


def _choose_pack(output_dim: int) -> int:
    """Rows packed per lane-dense output row; pack*output_dim is a multiple of 128."""
    if output_dim % 128 == 0:
        return 1
    pack = 128 // math.gcd(output_dim, 128)   # == lcm(D, 128) // D
    if pack * output_dim <= 2048:             # keep W a modest multiple of 128
        return pack
    return 1  # rare awkward D: fall back to masked partial stores (still correct)


def _sinpos_kernel(pos_ref, freq_ref, out_ref):
    """One (block_rows, W) tile of the packed embedding table.

    pos_ref  : (block_rows, K) f32  -- [pos columns | 1.0 | zero pad]
    freq_ref : (K, W)          f32  -- [block-diag freq rows ; phase row ; zero pad]
    out_ref  : (block_rows, W) f32
    """
    # angle[r, c*D + j] = pos[r, c] * freq[j] + phase[j], all on the (idle) MXU.
    angle = jnp.dot(pos_ref[...], freq_ref[...], preferred_element_type=jnp.float32)
    # cos(x) = sin(x + pi/2): a single transcendental per output element.
    out_ref[...] = jnp.sin(angle)


def sinusoidal_position_embedding(position_ids: jax.Array,
                                  output_dim: int,
                                  tile_rows: int = 1024) -> jax.Array:
    """position_ids: (N,) float/int -> (N, output_dim) float32."""
    assert position_ids.ndim == 1, "position_ids must be 1-D (module flattens batch)"
    assert output_dim % 2 == 0, "output_dim must be even (sin/cos interleave)"
    n = position_ids.shape[0]

    # --- lane-dense packing: `pack` original rows per (pack*D)-wide output row ---
    pack = _choose_pack(output_dim)
    w = pack * output_dim

    # --- grid / tile shaping (balanced, <= ~4 MiB output tile, >=2 tiles for v7x) ---
    n_packed = _cdiv(n, pack)
    vmem_row_cap = max(8, ((4 * 1024 * 1024) // (w * 4)) // 8 * 8)
    tile_cap = max(8, min(_round_up(tile_rows, 8), vmem_row_cap))
    min_tiles = 2 if n_packed >= 16 else 1          # keep both v7x TCs busy
    num_tiles = max(_cdiv(n_packed, tile_cap), min_tiles)
    block_rows = _round_up(_cdiv(n_packed, num_tiles), 8)
    num_tiles = _cdiv(n_packed, block_rows)
    n_pad_packed = num_tiles * block_rows
    n_pad = n_pad_packed * pack

    # --- wrapper-side constants (tiny; streamed in once, resident across grid) ---
    half = output_dim // 2
    idx = jnp.arange(half, dtype=jnp.float32)
    freq = jnp.power(10000.0, -2.0 * idx / output_dim)                       # (D/2,)
    freq_row = jnp.repeat(freq, 2)                                           # (D,)
    phase_row = jnp.tile(jnp.array([0.0, math.pi / 2.0], jnp.float32), half) # (D,)

    k_dim = _round_up(pack + 1, 8)   # contraction dim for the MXU (padded to sublanes)
    freq_blockdiag = jnp.kron(jnp.eye(pack, dtype=jnp.float32), freq_row[None, :])  # (pack, W)
    phase_full = jnp.tile(phase_row, pack)[None, :]                                  # (1, W)
    freq_ext = jnp.concatenate(
        [freq_blockdiag, phase_full,
         jnp.zeros((k_dim - pack - 1, w), jnp.float32)], axis=0)             # (K, W)

    pos = jnp.pad(position_ids.astype(jnp.float32), (0, n_pad - n))
    pos_packed = pos.reshape(n_pad_packed, pack)
    pos_ext = jnp.concatenate(
        [pos_packed, jnp.ones((n_pad_packed, 1), jnp.float32),
         jnp.zeros((n_pad_packed, k_dim - pack - 1), jnp.float32)], axis=1)  # (rows, K)

    out_packed = pl.pallas_call(
        _sinpos_kernel,
        out_shape=jax.ShapeDtypeStruct((n_pad_packed, w), jnp.float32),
        grid=(num_tiles,),
        in_specs=[
            pl.BlockSpec((block_rows, k_dim), lambda i: (i, 0)),
            pl.BlockSpec((k_dim, w), lambda i: (0, 0)),   # constant, stays resident
        ],
        out_specs=pl.BlockSpec((block_rows, w), lambda i: (i, 0)),
        compiler_params=pltpu.CompilerParams(
            dimension_semantics=("parallel",)),
    )(pos_ext, freq_ext)

    # Row-major (n_pad_packed, pack*D) -> (n_pad, D) is a free reshape.
    out = out_packed.reshape(n_pad, output_dim)
    if n_pad == n:
        return out
    # Padding slice: fuses into the caller's jit; standalone it costs one extra copy.
    return out[:n, :]


def _reference(position_ids: jax.Array, output_dim: int) -> jax.Array:
    # Pure-JAX replica of the PyTorch forward, for verification.
    pos = position_ids.astype(jnp.float32)[None]                      # (1, N)
    idx = jnp.arange(output_dim // 2, dtype=jnp.float32)
    idx = jnp.power(10000.0, -2.0 * idx / output_dim)                 # (D/2,)
    emb = jnp.einsum('bn,d->bnd', pos, idx)                           # (1, N, D/2)
    emb = jnp.stack([jnp.sin(emb), jnp.cos(emb)], axis=-1)            # (1, N, D/2, 2)
    return emb.reshape(-1, output_dim)                                # (N, D)


if __name__ == "__main__":
    key = jax.random.PRNGKey(0)
    k1, k2, k3 = jax.random.split(key, 3)

    # Config 1: typical small demo — seq=16, D=32 (packed: pack=4, W=128).
    seq, output_dim = 16, 32
    pos_ids = jax.random.randint(k1, (seq,), 0, 100).astype(jnp.float32)
    out = jax.block_until_ready(sinusoidal_position_embedding(pos_ids, output_dim))
    ref = _reference(pos_ids, output_dim)
    assert out.shape == (seq, output_dim)
    assert jnp.allclose(out, ref, atol=5e-5, rtol=5e-5)

    # Config 2: unpacked path (D multiple of 128), ragged N, grid of 2 tiles.
    seq2, d2 = 24, 128
    pos2 = jax.random.randint(k2, (seq2,), 0, 100).astype(jnp.float32)
    out2 = jax.block_until_ready(sinusoidal_position_embedding(pos2, d2))
    ref2 = _reference(pos2, d2)
    assert out2.shape == (seq2, d2)
    assert jnp.allclose(out2, ref2, atol=5e-5, rtol=5e-5)

    # Config 3: generalized lcm packing (D=48 -> pack=8, W=384).
    seq3, d3 = 20, 48
    pos3 = jax.random.randint(k3, (seq3,), 0, 100).astype(jnp.float32)
    out3 = jax.block_until_ready(sinusoidal_position_embedding(pos3, d3))
    ref3 = _reference(pos3, d3)
    assert out3.shape == (seq3, d3)
    assert jnp.allclose(out3, ref3, atol=5e-5, rtol=5e-5)

    print("KERNEL_OK")
</pallas_src>

<mosaic_0001>
module attributes {stable_mosaic.version = 11 : i64} {
  func.func @_sinpos_kernel(%arg0: i32, %arg1: memref<8x8xf32, #tpu.memory_space<vmem>>, %arg2: memref<8x128xf32, #tpu.memory_space<vmem>>, %arg3: memref<8x128xf32, #tpu.memory_space<vmem>>) attributes {dimension_semantics = [#tpu.dimension_semantics<parallel>], iteration_bounds = array<i64: 1>, scalar_prefetch = 0 : i64, scratch_operands = 0 : i64, tpu.core_type = #tpu.core_type<tc>, window_params = [{transform_indices = @transform_0, window_bounds = array<i64: 8, 8>}, {pipeline_mode = #tpu.pipeline_mode<synchronous>, transform_indices = @transform_1, window_bounds = array<i64: 8, 128>}, {transform_indices = @transform_2, window_bounds = array<i64: 8, 128>}]} {
    %c0 = arith.constant 0 : index
    %c0_0 = arith.constant 0 : index
    %0 = vector.load %arg1[%c0, %c0_0] : memref<8x8xf32, #tpu.memory_space<vmem>>, vector<8x8xf32>
    %c0_1 = arith.constant 0 : index
    %c0_2 = arith.constant 0 : index
    %1 = vector.load %arg2[%c0_1, %c0_2] : memref<8x128xf32, #tpu.memory_space<vmem>>, vector<8x128xf32>
    %cst = arith.constant dense<0.000000e+00> : vector<8x128xf32>
    %2 = tpu.matmul %0, %1, %cst {dimension_numbers = #tpu.dot_dimension_numbers<[1], [0], [0], [1], [0, 0, 1, 1], [], []>} : vector<8x8xf32>, vector<8x128xf32>, vector<8x128xf32> -> vector<8x128xf32>
    %3 = math.sin %2 : vector<8x128xf32>
    %c0_3 = arith.constant 0 : index
    %c0_4 = arith.constant 0 : index
    %4 = vector.load %arg3[%c0_3, %c0_4] : memref<8x128xf32, #tpu.memory_space<vmem>>, vector<8x128xf32>
    tpu.vector_store %arg3[%c0_3, %c0_4], %3 {strides = array<i32>} : memref<8x128xf32, #tpu.memory_space<vmem>>, vector<8x128xf32>,
    return
  }
  func.func @transform_0(%arg0: i32) -> (i32, i32) {
    %c0_i32 = arith.constant 0 : i32
    %c0_i32_0 = arith.constant 0 : i32
    return %arg0, %c0_i32 : i32, i32
  }
  func.func @transform_1(%arg0: i32) -> (i32, i32) {
    %c0_i32 = arith.constant 0 : i32
    %c0_i32_0 = arith.constant 0 : i32
    %c0_i32_1 = arith.constant 0 : i32
    return %c0_i32, %c0_i32_0 : i32, i32
  }
  func.func @transform_2(%arg0: i32) -> (i32, i32) {
    %c0_i32 = arith.constant 0 : i32
    %c0_i32_0 = arith.constant 0 : i32
    return %arg0, %c0_i32 : i32, i32
  }
}

</mosaic_0001>

<llo_original>
// kernel: tpu_custom_call.1
$region0: #{tpu_custom_call.1}
  #allocation0 [shape = 'u32[]', space=smem, size = 0x4, offset = 0x4, fixed_abs, tag = 'smem constant byte address 0x4 - core index']
  #allocation1 [shape = 'u32[144,128]{1,0:T(1,128)}', space=vmem, size = 0x12000, scoped, tag = 'internal scratch']
  %s0 = inlined_call_operand.hbm [shape: f32[8,8], index: 0, kind: input, shape index: {}]
  %s1 = inlined_call_operand.hbm [shape: f32[8,128], index: 1, kind: input, shape index: {}]
  %s2 = inlined_call_operand.hbm [shape: f32[8,128], index: 2, kind: output, shape index: {}]
  %s3 = sld [smem:[#allocation0]]
  $region26: #{tpu_custom_call.1} parent=0
    _
  %s5 = ssub.s32 1, %s3
  %s6 = scalar_select 0, %s5, %s3
  $region1: #{tpu_custom_call.1} parent=0
    #allocation2 [shape = 'u8[4096]{0}', space=vmem, size = 0x1000, scoped, tag = 'input window, operand 0, single buffered']
    #allocation3 [shape = 's32[1]{0}', space=sflag, size = 0x4, scoped, tag = 'scoped memory for tpu_custom_call.1']
    #allocation4 [shape = 's32[1]{0}', space=sflag, size = 0x4, scoped, tag = 'scoped memory for tpu_custom_call.1']
    #allocation5 [shape = 'u8[4096]{0}', space=vmem, size = 0x1000, scoped, tag = 'input window, operand 1, single buffered']
    #allocation6 [shape = 's32[1]{0}', space=sflag, size = 0x4, scoped, tag = 'scoped memory for tpu_custom_call.1']
    #allocation7 [shape = 'u8[4096]{0}', space=vmem, size = 0x1000, scoped, tag = 'output window, operand 0, single buffered']
    %7 = vsyncpa [#allocation3], 0
    %8 = vsyncpa [#allocation6], 0
    %9 = vsyncpa [#allocation4], 0
    // Predicated region
    $region2: #{tpu_custom_call.1} parent=1 // pred_check
      _
    $region3: #{tpu_custom_call.1} parent=1 // pred_check_branch
      %11 = sbr.rel (0) target = $region5
    $region4: #{tpu_custom_call.1} parent=1 // pred_region
      %s13 = ssub.s32 128, 128
      %14 = vsyncadd [#allocation3], %s13
      %s16 = sshll.u32 [#allocation2], 4
      %s17 = int_to_ptr.vmem [resolvable:$true] %s16
      %19 = dma.hbm_to_vmem [thread:$0]  %s0, 128, %s17, [#allocation3]
    $region5: #{tpu_custom_call.1} parent=1 // pred_fallthru
      _
    // Predicated region
    $region6: #{tpu_custom_call.1} parent=1 // pred_check
      _
    $region7: #{tpu_custom_call.1} parent=1 // pred_check_branch
      %21 = sbr.rel (0) target = $region9
    $region8: #{tpu_custom_call.1} parent=1 // pred_region
      %s23 = ssub.s32 128, 128
      %24 = vsyncadd [#allocation6], %s23
      %s26 = sshll.u32 [#allocation5], 4
      %s27 = int_to_ptr.vmem [resolvable:$true] %s26
      %29 = dma.hbm_to_vmem [thread:$0]  %s1, 128, %s27, [#allocation6]
    $region9: #{tpu_custom_call.1} parent=1 // pred_fallthru
      _
    // Predicated region
    $region10: #{tpu_custom_call.1} parent=1 // pred_check
      _
    $region11: #{tpu_custom_call.1} parent=1 // pred_check_branch
      %31 = sbr.rel (0) target = $region13
    $region12: #{tpu_custom_call.1} parent=1 // pred_region
      %32 = dma.done [#allocation3], 128
    $region13: #{tpu_custom_call.1} parent=1 // pred_fallthru
      _
    // Predicated region
    $region14: #{tpu_custom_call.1} parent=1 // pred_check
      _
    $region15: #{tpu_custom_call.1} parent=1 // pred_check_branch
      %34 = sbr.rel (0) target = $region17
    $region16: #{tpu_custom_call.1} parent=1 // pred_region
      %35 = dma.done [#allocation6], 128
    $region17: #{tpu_custom_call.1} parent=1 // pred_fallthru
      _
    %v36 = vld [vmem:[#allocation2] sm:$0xff]
    %v37 = vld [vmem:[#allocation5] sm:$0xff]
    %vm38 = vcmask 64512
    %v40 = vsel %vm38, %v36, 0
    %42 = vmatprep.subr.mxu0 0.0
    %43 = vmatpush1.msra.mxu0 %v37
    %44 = vmatprep.subr.mxu0 0.0
    %45 = vmatpush1.msra.mxu0 0.0
    %46 = vmatprep.subr.mxu0 0.0
    %47 = vmatpush1.msra.mxu0 0.0
    %48 = vmatprep.subr.mxu0 0.0
    %49 = vmatpush1.msra.mxu0 0.0
    %50 = vmatprep.subr.mxu0 0.0
    %51 = vmatpush1.msra.mxu0 0.0
    %52 = vmatprep.subr.mxu0 0.0
    %53 = vmatpush1.msra.mxu0 0.0
    %54 = vmatprep.subr.mxu0 0.0
    %55 = vmatpush1.msra.mxu0 0.0
    %56 = vmatprep.subr.mxu0 0.0
    %57 = vmatpush1.msra.mxu0 0.0
    %58 = vmatprep.subr.mxu0 0.0
    %59 = vmatpush1.msra.mxu0 0.0
    %60 = vmatprep.subr.mxu0 0.0
    %61 = vmatpush1.msra.mxu0 0.0
    %62 = vmatprep.subr.mxu0 0.0
    %63 = vmatpush1.msra.mxu0 0.0
    %64 = vmatprep.subr.mxu0 0.0
    %65 = vmatpush1.msra.mxu0 0.0
    %66 = vmatprep.subr.mxu0 0.0
    %67 = vmatpush1.msra.mxu0 0.0
    %68 = vmatprep.subr.mxu0 0.0
    %69 = vmatpush1.msra.mxu0 0.0
    %70 = vmatprep.subr.mxu0 0.0
    %71 = vmatpush1.msra.mxu0 0.0
    %72 = vmatprep.subr.mxu0 0.0
    %73 = vmatpush1.msra.mxu0 0.0
    %74 = vmatprep.subr.mxu0 0.0
    %75 = vmatpush1.msra.mxu0 0.0
    %76 = vmatprep.subr.mxu0 0.0
    %77 = vmatpush1.msra.mxu0 0.0
    %78 = vmatprep.subr.mxu0 0.0
    %79 = vmatpush1.msra.mxu0 0.0
    %80 = vmatprep.subr.mxu0 0.0
    %81 = vmatpush1.msra.mxu0 0.0
    %82 = vmatprep.subr.mxu0 0.0
    %83 = vmatpush1.msra.mxu0 0.0
    %84 = vmatprep.subr.mxu0 0.0
    %85 = vmatpush1.msra.mxu0 0.0
    %86 = vmatprep.subr.mxu0 0.0
    %87 = vmatpush1.msra.mxu0 0.0
    %88 = vmatprep.subr.mxu0 0.0
    %89 = vmatpush1.msra.mxu0 0.0
    %90 = vmatprep.subr.mxu0 0.0
    %91 = vmatpush1.msra.mxu0 0.0
    %92 = vmatprep.subr.mxu0 0.0
    %93 = vmatpush1.msra.mxu0 0.0
    %94 = vmatprep.subr.mxu0 0.0
    %95 = vmatpush1.msra.mxu0 0.0
    %96 = vmatprep.subr.mxu0 0.0
    %97 = vmatpush1.msra.mxu0 0.0
    %98 = vmatprep.subr.mxu0 0.0
    %99 = vmatpush1.msra.mxu0 0.0
    %100 = vmatprep.subr.mxu0 0.0
    %101 = vmatpush1.msra.mxu0 0.0
    %102 = vmatprep.subr.mxu0 0.0
    %103 = vmatpush1.msra.mxu0 0.0
    %104 = vmatprep.subr.mxu0 0.0
    %105 = vmatpush1.msra.mxu0 0.0
    %106 = vmatprep.mubr.f32.mxu0 0.0
    %107 = vmatmul.mubr.f32.gmra.mrb[0].mxu0 %v40
    %v108 = vpop.f32.mrb[0].mxu0
    %v109 = vadd.f32 0.0, %v108
    %v110 = vpop.f32.mrb[0].mxu0
    %111 = vdwg.mxu0
    %v112 = vand.u32 2147483647, %v109
    %vm113 = vcmp.le.f32.partialorder %v112, 0.7853982
    %vm114 = vcmp.lt.s32.totalorder %v109, 0
    %v115 = vand.u32 %v109, 2139095040
    %v116 = vshrl.u32 %v115, 23
    %v117 = vsub.s32 %v116, 127
    %v118 = vand.u32 2147483647, %v109
    %v119 = vand.u32 %v118, 8388607
    %v120 = vor.u32 %v119, 8388608
    %v121 = vsub.s32 0, %v120
    %v122 = vadd.s32 %v117, 1
    %vm123 = vcmp.gt.s32.totalorder %v122, 0
    %v124 = vsel %vm123, %v122, 0
    %v125 = vshrl.u32 %v124, 5
    %v126 = vand.u32 %v124, 31
    %v127 = vsub.s32 32, %v126
    %v128 = vshrl.u32 683565275, %v127
    %v129 = vshll.u32 683565275, %v126
    %v130 = vshrl.u32 2475754826, %v127
    %v131 = vor.u32 %v129, %v130
    %v132 = vshll.u32 2475754826, %v126
    %v133 = vshrl.u32 2131351028, %v127
    %v134 = vor.u32 %v132, %v133
    %v135 = vshll.u32 2131351028, %v126
    %v136 = vshrl.u32 2102212464, %v127
    %v137 = vor.u32 %v135, %v136
    %v138 = vshll.u32 2102212464, %v126
    %v139 = vshrl.u32 920167782, %v127
    %v140 = vor.u32 %v138, %v139
    %v141 = vshll.u32 920167782, %v126
    %v142 = vshrl.u32 1326507024, %v127
    %v143 = vor.u32 %v141, %v142
    %vm144 = vcmp.lt.s32.totalorder %v125, 1
    %vm145 = vcmp.lt.s32.totalorder %v125, 2
    %vm146 = vcmp.lt.s32.totalorder %v125, 3
    %vm147 = vcmp.lt.s32.totalorder %v125, 4
    %v148 = vsel %vm144, %v128, %v131
    %v149 = vsel %vm147, %v137, 2102212464
    %v150 = vsel %vm146, %v134, %v149
    %v151 = vsel %vm145, %v148, %v150
    %v152 = vsel %vm144, %v131, %v134
    %v153 = vsel %vm147, %v140, 920167782
    %v154 = vsel %vm146, %v137, %v153
    %v155 = vsel %vm145, %v152, %v154
    %v156 = vsel %vm144, %v134, %v137
    %v157 = vsel %vm147, %v143, 1326507024
    %v158 = vsel %vm146, %v140, %v157
    %v159 = vsel %vm145, %v156, %v158
    %v160 = vshll.u32 %v120, 8
    %v161 = vmul.u32.u64.compose %v160, %v159
    %v162 = vextract.low.u32 %v161
    %v163 = vextract.high.u32 %v161
    %v164 = vmul.u32.u64.compose %v160, %v155
    %v165 = vextract.low.u32 %v164
    %v166 = vextract.high.u32 %v164
    %v167 = vmul.u32 %v160, %v151
    %v168 = vadd.s32 %v163, %v165
    %vm169 = vc.u32 %v163, %v165
    %v170 = vadd.s32 %v166, 1
    %v171 = vsel %vm169, %v170, %v166
    %v172 = vadd.s32 %v167, %v171
    %v173 = vadd.s32 %v172, 536870912
    %v174 = vshrl.u32 %v173, 30
    %v175 = vshll.u32 %v174, 30
    %v176 = vsub.s32 %v172, %v175
    %vm177 = vcmp.lt.s32.totalorder %v176, 0
    %v178 = vsub.s32 0, %v176
    %v179 = vsel %vm177, %v178, %v176
    %v180 = vclz %v179
    %v181 = vsub.s32 %v180, 2
    %vm182 = vcmp.gt.s32.totalorder 0, %v181
    %v183 = vsel %vm182, 0, %v181
    %v184 = vsub.s32 32, %v183
    %v185 = vshll.u32 %v176, %v183
    %v186 = vshrl.u32 %v168, %v184
    %v187 = vor.u32 %v185, %v186
    %v188 = vsub.s32 4294967266, %v183
    %v189 = vadd.s32 %v188, 127
    %v190 = vshll.u32 %v189, 23
    %v191 = vor.u32 4788187, %v190
    %v192 = vand.u32 2147483647, %v191
    %v194 = vcvt.s32.f32 %v187
    %v195 = vmul.f32 %v194, %v192
    %v196 = vxor.u32 %v195, 2147483648
    %v197 = vsel %vm114, %v196, %v195
    %v198 = vsub.s32 4, %v174
    %v199 = vsel %vm114, %v198, %v174
    %v200 = vsel %vm113, %v109, %v197
    %v201 = vsel %vm113, 0, %v199
    %v202 = vcosq.f32.pop %v200
    %v203 = vsinq.f32.pop %v200
    %vm204 = vweird.f32 %v109
    %v205 = vadd.s32 %v201, 3
    %v206 = vand.u32 %v205, 3
    %vm207 = vcmp.lt.s32.totalorder %v206, 2
    %vm208 = vcmp.eq.s32.totalorder %v206, 0
    %v209 = vxor.u32 %v203, 2147483648
    %v210 = vsel %vm208, %v202, %v209
    %vm211 = vcmp.eq.s32.totalorder %v206, 2
    %v212 = vxor.u32 %v202, 2147483648
    %v213 = vsel %vm211, %v212, %v203
    %v214 = vsel %vm207, %v210, %v213
    %v215 = vsel %vm204, nan, %v214
    %216 = vst [vmem:[#allocation7] sm:$0xff] %v215
    // Predicated region
    $region18: #{tpu_custom_call.1} parent=1 // pred_check
      _
    $region19: #{tpu_custom_call.1} parent=1 // pred_check_branch
      %218 = sbr.rel (0) target = $region21
    $region20: #{tpu_custom_call.1} parent=1 // pred_region
      %s220 = ssub.s32 128, 128
      %221 = vsyncadd [#allocation4], %s220
      %s223 = sshll.u32 [#allocation7], 4
      %s224 = int_to_ptr.vmem [resolvable:$true] %s223
      %226 = dma.vmem_to_hbm [thread:$0]  %s224, 128, %s2, [#allocation4]
    $region21: #{tpu_custom_call.1} parent=1 // pred_fallthru
      _
    // Predicated region
    $region22: #{tpu_custom_call.1} parent=1 // pred_check
      _
    $region23: #{tpu_custom_call.1} parent=1 // pred_check_branch
      %228 = sbr.rel (0) target = $region25
    $region24: #{tpu_custom_call.1} parent=1 // pred_region
      %229 = dma.done [#allocation4], 128
    $region25: #{tpu_custom_call.1} parent=1 // pred_fallthru
      _
    %230 = vsyncpa [#allocation3], 1
    %231 = vsyncpa [#allocation6], 1
    %232 = vsyncpa [#allocation4], 1

</llo_original>
